<compile_context>
chip_gen: v5e
topology: v5e:2x2
jax: 0.10.0
libtpu: 0.0.40
codegen_flags: <defaults>
</compile_context>

<pallas_src>
import math

import jax
import jax.numpy as jnp
from jax.experimental import pallas as pl
from jax.experimental.pallas import tpu as pltpu

_MIB = 1024 * 1024


def _round_up(x, m):
    return ((x + m - 1) // m) * m


def _vmem_budget_bytes():
    """Per-generation VMEM budget with headroom (never the full physical VMEM)."""
    try:
        cap = pltpu.get_tpu_info().vmem_capacity_bytes
    except Exception:
        cap = 64 * _MIB  # conservative (v7x-sized) fallback
    return int(max(32 * _MIB, min(cap - 16 * _MIB, 100 * _MIB)))


def _fit_tile(dim_p, fits, candidates=(4096, 2048, 1024, 512, 256, 128)):
    """Largest tile dividing dim_p (a multiple of 128) for which fits(t) holds."""
    if fits(dim_p):
        return dim_p
    for t in candidates:
        if t < dim_p and dim_p % t == 0 and fits(t):
            return t
    return 128


def _maybe_pad(a, pads):
    if any(p != (0, 0) for p in pads):
        a = jnp.pad(a, pads)
    return a


# ----------------------- Phase 1: support = x @ W -----------------------
def _support_kernel(x_ref, w_ref, s_ref, acc_ref):
    # x_ref: (tr, tfi), w_ref: (tfi, tfo), s_ref: (tr, tfo); F_in reduction last.
    fi = pl.program_id(2)

    @pl.when(fi == 0)
    def _():
        acc_ref[...] = jnp.zeros(acc_ref.shape, acc_ref.dtype)

    acc_ref[...] += jnp.dot(
        x_ref[...], w_ref[...], preferred_element_type=jnp.float32
    )

    @pl.when(fi == pl.num_programs(2) - 1)
    def _():
        s_ref[...] = acc_ref[...].astype(s_ref.dtype)


# ------------------ Phase 2: out = adj @ support (+bias) ------------------
# Grid: (B, n_m, n_fo, n_k); reduction over k (adjacency columns) is last.
def _agg_inplace_kernel(adj_ref, s_ref, out_ref):
    # float32 output: accumulate directly into the resident output block.
    k = pl.program_id(3)

    @pl.when(k == 0)
    def _():
        out_ref[...] = jnp.zeros(out_ref.shape, out_ref.dtype)

    out_ref[0] += jnp.dot(adj_ref[0], s_ref[0], preferred_element_type=jnp.float32)


def _agg_inplace_bias_kernel(adj_ref, s_ref, b_ref, out_ref):
    k = pl.program_id(3)

    @pl.when(k == 0)
    def _():
        out_ref[...] = jnp.zeros(out_ref.shape, out_ref.dtype)

    out_ref[0] += jnp.dot(adj_ref[0], s_ref[0], preferred_element_type=jnp.float32)

    @pl.when(k == pl.num_programs(3) - 1)
    def _():
        out_ref[0] += b_ref[0]


def _agg_scratch_kernel(adj_ref, s_ref, out_ref, acc_ref):
    # Non-f32 output: keep the f32 accumulator in scratch.
    k = pl.program_id(3)

    @pl.when(k == 0)
    def _():
        acc_ref[...] = jnp.zeros(acc_ref.shape, acc_ref.dtype)

    acc_ref[...] += jnp.dot(adj_ref[0], s_ref[0], preferred_element_type=jnp.float32)

    @pl.when(k == pl.num_programs(3) - 1)
    def _():
        out_ref[0] = acc_ref[...].astype(out_ref.dtype)


def _agg_scratch_bias_kernel(adj_ref, s_ref, b_ref, out_ref, acc_ref):
    k = pl.program_id(3)

    @pl.when(k == 0)
    def _():
        acc_ref[...] = jnp.zeros(acc_ref.shape, acc_ref.dtype)

    acc_ref[...] += jnp.dot(adj_ref[0], s_ref[0], preferred_element_type=jnp.float32)

    @pl.when(k == pl.num_programs(3) - 1)
    def _():
        out_ref[0] = (acc_ref[...] + b_ref[0]).astype(out_ref.dtype)


def graph_convolution(x, adj, weight, bias=None, *,
                      compute_dtype=None, agg_dtype=jnp.bfloat16):
    """GCN forward: adj @ (x @ weight) (+ bias).

    x: (B, N, F_in), adj: (B, N, N), weight: (F_in, F_out),
    bias: (1, 1, F_out) or None. Returns (B, N, F_out) in x.dtype.

    compute_dtype: phase-1 matmul operand dtype (default: x.dtype).
    agg_dtype: dtype of adj and the stored `support` intermediate for phase 2
      (default bfloat16 — phase 2 is HBM-bound on the O(B*N^2) adj stream;
      accumulation is always float32). Pass jnp.float32 for exact results.
    """
    out_dtype = x.dtype
    compute_dtype = jnp.dtype(x.dtype if compute_dtype is None else compute_dtype)
    agg_dtype = jnp.dtype(agg_dtype)

    B, N, F_in = x.shape
    F_out = weight.shape[1]

    # Lane-dense padding: features and nodes padded to multiples of 128.
    F_in_p = _round_up(F_in, 128)
    F_out_p = _round_up(F_out, 128)
    N_p = _round_up(N, 128)

    budget = _vmem_budget_bytes()
    c_it = compute_dtype.itemsize
    a_it = agg_dtype.itemsize
    o_it = jnp.dtype(out_dtype).itemsize

    # ---------------- Phase 1: support = x @ W (once per node) ----------------
    rows = B * N_p
    x_p = _maybe_pad(x, ((0, 0), (0, N_p - N), (0, F_in_p - F_in)))
    if x_p.dtype != compute_dtype:
        x_p = x_p.astype(compute_dtype)
    x_flat = x_p.reshape(rows, F_in_p)          # fold batch into M for MXU occupancy
    w_p = _maybe_pad(weight, ((0, F_in_p - F_in), (0, F_out_p - F_out)))
    if w_p.dtype != compute_dtype:
        w_p = w_p.astype(compute_dtype)

    # Feature tiling: bounds the weight block / accumulator on 64-MiB VMEM (v7x);
    # collapses to a single block at small shapes.
    tfo1 = _fit_tile(F_out_p, lambda t: t <= 1024)
    tfi = _fit_tile(F_in_p, lambda t: 2 * t * tfo1 * c_it <= budget // 4)

    def _fits_tr(t):
        resident = (2 * t * tfi * c_it + 2 * tfi * tfo1 * c_it
                    + 2 * t * tfo1 * a_it + t * tfo1 * 4)
        return resident <= (3 * budget) // 4

    tr = _fit_tile(rows, _fits_tr, candidates=(1024, 512, 256, 128))
    # Megacore (v7x, 2 TCs): keep at least 2 parallel blocks when possible.
    while (rows // tr) * (F_out_p // tfo1) < 2 and tr > 128:
        tr //= 2

    n_fo1 = F_out_p // tfo1
    n_fi = F_in_p // tfi
    support_cost = pl.CostEstimate(
        flops=2 * rows * F_in_p * F_out_p,
        transcendentals=0,
        bytes_accessed=(n_fo1 * rows * F_in_p * c_it
                        + (rows // tr) * F_in_p * F_out_p * c_it
                        + rows * F_out_p * a_it),
    )
    support = pl.pallas_call(
        _support_kernel,
        out_shape=jax.ShapeDtypeStruct((rows, F_out_p), agg_dtype),
        grid_spec=pltpu.PrefetchScalarGridSpec(
            num_scalar_prefetch=0,
            grid=(rows // tr, n_fo1, n_fi),
            in_specs=[
                pl.BlockSpec((tr, tfi), lambda r, fo, fi: (r, fi)),
                pl.BlockSpec((tfi, tfo1), lambda r, fo, fi: (fi, fo)),
            ],
            out_specs=pl.BlockSpec((tr, tfo1), lambda r, fo, fi: (r, fo)),
            scratch_shapes=[pltpu.VMEM((tr, tfo1), jnp.float32)],
        ),
        compiler_params=pltpu.CompilerParams(
            dimension_semantics=("parallel", "parallel", "arbitrary"),
            vmem_limit_bytes=budget,
        ),
        cost_estimate=support_cost,
    )(x_flat, w_p)
    support = support.reshape(B, N_p, F_out_p)

    # ---------------- Phase 2: out = adj @ support (+ bias) ----------------
    adj_p = _maybe_pad(adj, ((0, 0), (0, N_p - N), (0, N_p - N)))
    if adj_p.dtype != agg_dtype:
        adj_p = adj_p.astype(agg_dtype)
    # TODO(synk): offer an int8 (v5e/v6e) / fp8 (v7x) quantized-adj path for
    # binary / row-normalized adjacencies to cut adj HBM traffic a further 2x.

    use_scratch = jnp.dtype(out_dtype) != jnp.float32

    tk = _fit_tile(N_p, lambda t: t <= 512, candidates=(512, 256, 128))
    tfo2 = _fit_tile(F_out_p, lambda t: t <= 1024)

    def _fits_tm(t):
        resident = (2 * t * tk * a_it            # adj block, double-buffered
                    + 2 * tk * tfo2 * a_it       # support block, double-buffered
                    + 2 * t * tfo2 * o_it        # out block, double-buffered
                    + 2 * tfo2 * 4               # bias block
                    + (t * tfo2 * 4 if use_scratch else 0))
        return resident <= (3 * budget) // 4

    # tm decoupled from tk and grown to cut support re-reads / per-step overhead.
    tm = _fit_tile(N_p, _fits_tm, candidates=(2048, 1024, 512, 256, 128))
    n_m = N_p // tm
    n_fo2 = F_out_p // tfo2
    # Megacore (v7x): keep at least 2 parallel blocks.
    while B * n_m * n_fo2 < 2 and tm > 128:
        tm //= 2
        n_m = N_p // tm
    n_k = N_p // tk

    agg_cost = pl.CostEstimate(
        flops=2 * B * N_p * N_p * F_out_p,
        transcendentals=0,
        bytes_accessed=(B * n_fo2 * N_p * N_p * a_it      # adj (re-read per F_out tile)
                        + B * n_m * N_p * F_out_p * a_it  # support re-read per row tile
                        + B * N_p * F_out_p * o_it),      # output
    )

    adj_spec = pl.BlockSpec((1, tm, tk), lambda b, m, fo, k: (b, m, k))
    sup_spec = pl.BlockSpec((1, tk, tfo2), lambda b, m, fo, k: (b, k, fo))
    out_spec = pl.BlockSpec((1, tm, tfo2), lambda b, m, fo, k: (b, m, fo))
    cparams = pltpu.CompilerParams(
        dimension_semantics=("parallel", "parallel", "parallel", "arbitrary"),
        vmem_limit_bytes=budget,
    )
    out_shape = jax.ShapeDtypeStruct((B, N_p, F_out_p), out_dtype)
    scratch = (pltpu.VMEM((tm, tfo2), jnp.float32),) if use_scratch else ()

    if bias is None:
        kernel = _agg_scratch_kernel if use_scratch else _agg_inplace_kernel
        in_specs = [adj_spec, sup_spec]
        operands = (adj_p, support)
    else:
        b_p = _maybe_pad(bias, ((0, 0), (0, 0), (0, F_out_p - F_out)))
        if b_p.dtype != jnp.float32:
            b_p = b_p.astype(jnp.float32)
        bias_spec = pl.BlockSpec((1, 1, tfo2), lambda b, m, fo, k: (0, 0, fo))
        kernel = _agg_scratch_bias_kernel if use_scratch else _agg_inplace_bias_kernel
        in_specs = [adj_spec, sup_spec, bias_spec]
        operands = (adj_p, support, b_p)

    out_p = pl.pallas_call(
        kernel,
        out_shape=out_shape,
        grid_spec=pltpu.PrefetchScalarGridSpec(
            num_scalar_prefetch=0,
            grid=(B, n_m, n_fo2, n_k),
            in_specs=in_specs,
            out_specs=out_spec,
            scratch_shapes=scratch,
        ),
        compiler_params=cparams,
        cost_estimate=agg_cost,
    )(*operands)

    return out_p[:, :N, :F_out]


def gcn_reference(x, adj, weight, bias=None):
    support = jnp.einsum("bnf,fo->bno", x, weight)
    out = jnp.einsum("bnm,bmo->bno", adj, support)
    if bias is not None:
        out = out + bias
    return out


if __name__ == "__main__":
    # Small shapes consistent with the module's forward:
    # batch=2, nodes=16, in_features=32, out_features=32
    B, N, F_in, F_out = 2, 16, 32, 32
    key = jax.random.PRNGKey(0)
    k_x, k_adj, k_w, k_b = jax.random.split(key, 4)

    x = jax.random.normal(k_x, (B, N, F_in), dtype=jnp.float32)
    adj = jax.random.uniform(k_adj, (B, N, N), dtype=jnp.float32)

    # Parameter init mirroring reset_parameters(): uniform(-stdv, stdv),
    # stdv = 1/sqrt(out_features).
    stdv = 1.0 / math.sqrt(F_out)
    weight = jax.random.uniform(k_w, (F_in, F_out), dtype=jnp.float32,
                                minval=-stdv, maxval=stdv)
    bias = jax.random.uniform(k_b, (1, 1, F_out), dtype=jnp.float32,
                              minval=-stdv, maxval=stdv)

    ref = gcn_reference(x, adj, weight, None)
    ref_b = gcn_reference(x, adj, weight, bias)

    # Exact path (f32 everywhere). Module default is bias=False.
    out = jax.block_until_ready(
        graph_convolution(x, adj, weight, None, agg_dtype=jnp.float32))
    assert out.shape == (B, N, F_out)
    assert jnp.allclose(out, ref, atol=1e-5, rtol=1e-5)

    out_b = jax.block_until_ready(
        graph_convolution(x, adj, weight, bias, agg_dtype=jnp.float32))
    assert out_b.shape == (B, N, F_out)
    assert jnp.allclose(out_b, ref_b, atol=1e-5, rtol=1e-5)

    # Default fast path: bf16 adj/support stream, f32 accumulation.
    # Loose tolerance reflects expected bf16 rounding, not a bug.
    out_fast = jax.block_until_ready(graph_convolution(x, adj, weight, None))
    assert out_fast.shape == (B, N, F_out)
    assert jnp.allclose(out_fast, ref, atol=5e-2, rtol=5e-2)

    out_fast_b = jax.block_until_ready(graph_convolution(x, adj, weight, bias))
    assert jnp.allclose(out_fast_b, ref_b, atol=5e-2, rtol=5e-2)

    print("KERNEL_OK")
</pallas_src>

<mosaic_0001>
module attributes {stable_mosaic.version = 11 : i64} {
  func.func @_support_kernel(%arg0: i32, %arg1: i32, %arg2: i32, %arg3: memref<128x128xf32, #tpu.memory_space<vmem>>, %arg4: memref<128x128xf32, #tpu.memory_space<vmem>>, %arg5: memref<128x128xf32, #tpu.memory_space<vmem>>, %arg6: memref<128x128xf32, #tpu.memory_space<vmem>>) attributes {dimension_semantics = [#tpu.dimension_semantics<parallel>, #tpu.dimension_semantics<parallel>, #tpu.dimension_semantics<arbitrary>], iteration_bounds = array<i64: 2, 1, 1>, scalar_prefetch = 0 : i64, scratch_operands = 1 : i64, tpu.core_type = #tpu.core_type<tc>, window_params = [{transform_indices = @transform_0, window_bounds = array<i64: 128, 128>}, {transform_indices = @transform_1, window_bounds = array<i64: 128, 128>}, {transform_indices = @transform_2, window_bounds = array<i64: 128, 128>}]} {
    %c0_i32 = arith.constant 0 : i32
    %0 = arith.cmpi eq, %arg2, %c0_i32 : i32
    %1 = arith.extui %0 : i1 to i32
    %c0_i32_0 = arith.constant 0 : i32
    %2 = arith.cmpi ne, %1, %c0_i32_0 : i32
    scf.if %2 {
      %cst_10 = arith.constant 0.000000e+00 : f32
      %12 = vector.broadcast %cst_10 : f32 to vector<128x128xf32>
      %c0_11 = arith.constant 0 : index
      %c0_12 = arith.constant 0 : index
      %13 = vector.load %arg6[%c0_11, %c0_12] : memref<128x128xf32, #tpu.memory_space<vmem>>, vector<128x128xf32>
      tpu.vector_store %arg6[%c0_11, %c0_12], %12 {strides = array<i32>} : memref<128x128xf32, #tpu.memory_space<vmem>>, vector<128x128xf32>,
    } else {
    }
    %c0 = arith.constant 0 : index
    %c0_1 = arith.constant 0 : index
    %3 = vector.load %arg6[%c0, %c0_1] : memref<128x128xf32, #tpu.memory_space<vmem>>, vector<128x128xf32>
    %c0_2 = arith.constant 0 : index
    %c0_3 = arith.constant 0 : index
    %4 = vector.load %arg3[%c0_2, %c0_3] : memref<128x128xf32, #tpu.memory_space<vmem>>, vector<128x128xf32>
    %c0_4 = arith.constant 0 : index
    %c0_5 = arith.constant 0 : index
    %5 = vector.load %arg4[%c0_4, %c0_5] : memref<128x128xf32, #tpu.memory_space<vmem>>, vector<128x128xf32>
    %cst = arith.constant dense<0.000000e+00> : vector<128x128xf32>
    %6 = tpu.matmul %4, %5, %cst {dimension_numbers = #tpu.dot_dimension_numbers<[1], [0], [0], [1], [0, 0, 1, 1], [], []>} : vector<128x128xf32>, vector<128x128xf32>, vector<128x128xf32> -> vector<128x128xf32>
    %7 = arith.addf %3, %6 : vector<128x128xf32>
    %c0_6 = arith.constant 0 : index
    %c0_7 = arith.constant 0 : index
    %8 = vector.load %arg6[%c0_6, %c0_7] : memref<128x128xf32, #tpu.memory_space<vmem>>, vector<128x128xf32>
    tpu.vector_store %arg6[%c0_6, %c0_7], %7 {strides = array<i32>} : memref<128x128xf32, #tpu.memory_space<vmem>>, vector<128x128xf32>,
    %c0_i32_8 = arith.constant 0 : i32
    %9 = arith.cmpi eq, %arg2, %c0_i32_8 : i32
    %10 = arith.extui %9 : i1 to i32
    %c0_i32_9 = arith.constant 0 : i32
    %11 = arith.cmpi ne, %10, %c0_i32_9 : i32
    scf.if %11 {
      %c0_10 = arith.constant 0 : index
      %c0_11 = arith.constant 0 : index
      %12 = vector.load %arg6[%c0_10, %c0_11] : memref<128x128xf32, #tpu.memory_space<vmem>>, vector<128x128xf32>
      %c0_12 = arith.constant 0 : index
      %c0_13 = arith.constant 0 : index
      %13 = vector.load %arg5[%c0_12, %c0_13] : memref<128x128xf32, #tpu.memory_space<vmem>>, vector<128x128xf32>
      tpu.vector_store %arg5[%c0_12, %c0_13], %12 {strides = array<i32>} : memref<128x128xf32, #tpu.memory_space<vmem>>, vector<128x128xf32>,
    } else {
    }
    return
  }
  func.func @transform_0(%arg0: i32, %arg1: i32, %arg2: i32) -> (i32, i32) {
    %c0_i32 = arith.constant 0 : i32
    return %arg0, %arg2 : i32, i32
  }
  func.func @transform_1(%arg0: i32, %arg1: i32, %arg2: i32) -> (i32, i32) {
    %c0_i32 = arith.constant 0 : i32
    return %arg2, %arg1 : i32, i32
  }
  func.func @transform_2(%arg0: i32, %arg1: i32, %arg2: i32) -> (i32, i32) {
    %c0_i32 = arith.constant 0 : i32
    return %arg0, %arg1 : i32, i32
  }
}

</mosaic_0001>

<llo_original>
// kernel: tpu_custom_call.1
$region0: #{tpu_custom_call.1}
  #allocation0 [shape = 'u32[]', space=smem, size = 0x4, offset = 0x4, fixed_abs, tag = 'smem constant byte address 0x4 - core index']
  #allocation1 [shape = 'u32[72,128]{1,0:T(1,128)}', space=vmem, size = 0x9000, scoped, tag = 'internal scratch']
  #allocation2 [shape = 'f32[128,128]{1,0:T(8,128)}', space=vmem, size = 0x10000, scoped, tag = 'scratch operand']
  %s0 = inlined_call_operand.hbm [shape: f32[256,128], index: 0, kind: input, shape index: {}]
  %s1 = inlined_call_operand.hbm [shape: f32[128,128], index: 1, kind: input, shape index: {}]
  %s2 = inlined_call_operand.hbm [shape: f32[256,128], index: 2, kind: output, shape index: {}]
  %s3 = sld [smem:[#allocation0]]
  $region57: #{tpu_custom_call.1} parent=0
    _
  %s5 = ssub.s32 1, %s3
  %s6 = scalar_select 0, %s5, %s3
  $region1: #{tpu_custom_call.1} parent=0
    #allocation3 [shape = 'u8[131072]{0}', space=vmem, size = 0x20000, scoped, tag = 'input window, operand 0']
    #allocation4 [shape = 's32[2]{0}', space=sflag, size = 0x8, scoped, tag = 'scoped memory for tpu_custom_call.1']
    #allocation5 [shape = 's32[2]{0}', space=sflag, size = 0x8, scoped, tag = 'scoped memory for tpu_custom_call.1']
    #allocation6 [shape = 'u8[65536]{0}', space=vmem, size = 0x10000, scoped, tag = 'input window, operand 1, single buffered']
    #allocation7 [shape = 's32[1]{0}', space=sflag, size = 0x4, scoped, tag = 'scoped memory for tpu_custom_call.1']
    #allocation8 [shape = 'u8[131072]{0}', space=vmem, size = 0x20000, scoped, tag = 'output window, operand 0']
    %7 = vsyncpa [#allocation4], 0
    %s8 = scalar_lea.sflag [#allocation4], 1
    %9 = vsyncpa %s8, 0
    %10 = vsyncpa [#allocation7], 0
    %11 = vsyncpa [#allocation5], 0
    %s12 = scalar_lea.sflag [#allocation5], 1
    %13 = vsyncpa %s12, 0
    loop: start=0, step=1, limit=4
    $region2: #{tpu_custom_call.1} parent=1 // loop_pre_header
      _
    $region3: #{tpu_custom_call.1} parent=1 // loop_header
      %s15 = sphi 0, %s19
      %p16 = scmp.ge.s32.totalorder %s15, 4
      %s22 = sphi 0, %s41
      %s23 = sphi 0, %s37
      %s24 = sphi 0, %s33
      %s25 = sphi 0, %s22
      %s26 = sphi 0, %s23
      %s27 = sphi 0, %s24
      %s28 = sphi 0, %s25
      %s29 = sphi 0, %s26
      %s30 = sphi 0, %s27
      %s46 = sphi 0, %s48
      %s49 = sphi 0, %s46
      %s50 = sphi 0, %s49
      %s66 = sphi 0, %s50
      %s74 = sphi 0, %s76
      %s77 = sphi 0, %s74
      %s78 = sphi 0, %s77
      %s94 = sphi 0, %s78
      %s102 = sphi 0, %s104
      %s105 = sphi 0, %s102
      %s106 = sphi 0, %s105
      %s122 = sphi 0, %s106
    $region4: #{tpu_custom_call.1} parent=1 // loop_header_branch
      %18 = sbr.rel (%p16) target = $region8
    $region5: #{tpu_custom_call.1} parent=1 // loop_body
      %s20 = ssub.s32 %s15, 1
      %s21 = ssub.s32 %s15, 2
      %s31 = sadd.s32 1, %s24
      %p32 = scmp.ge.s32.totalorder %s31, 1
      %s33 = scalar_select %p32, 0, %s31
      %s34 = sadd.s32 1, %s23
      %s35 = scalar_select %p32, %s34, %s23
      %p36 = scmp.ge.s32.totalorder %s35, 1
      %s37 = scalar_select %p36, 0, %s35
      %s38 = sadd.s32 1, %s22
      %s39 = scalar_select %p36, %s38, %s22
      %p40 = scmp.ge.s32.totalorder %s39, 2
      %s41 = scalar_select %p40, 0, %s39
      %s42 = ssub.s32 %s22, %s41
      %s43 = ssub.s32 %s24, %s33
      %s44 = sor.u32 %s42, %s43
      %p45 = scmp.eq.s32.totalorder %s44, 0
      %s47 = sadd.s32 %s46, 1
      %s48 = scalar_select %p45, %s46, %s47
      %p51 = pneg %p45
      %p52 = scmp.eq.s32.totalorder %s15, 1
      %p53 = por %p51, %p52
      %p54 = scmp.ne.s32.totalorder %s46, %s49
      %p55 = scmp.eq.s32.totalorder %s15, 0
      %p56 = por %p54, %p55
      %p57 = scmp.ne.s32.totalorder %s46, %s49
      %p58 = scmp.eq.s32.totalorder %s20, 1
      %p59 = por %p57, %p58
      %p60 = scmp.ne.s32.totalorder %s49, %s50
      %p61 = scmp.eq.s32.totalorder %s20, 0
      %p62 = por %p60, %p61
      %p63 = scmp.ne.s32.totalorder %s49, %s50
      %p64 = scmp.eq.s32.totalorder %s21, 1
      %p65 = por %p63, %p64
      %p67 = scmp.ne.s32.totalorder %s50, %s66
      %p68 = scmp.eq.s32.totalorder %s21, 0
      %p69 = por %p67, %p68
      %s70 = ssub.s32 %s24, %s33
      %s71 = ssub.s32 %s23, %s37
      %s72 = sor.u32 %s70, %s71
      %p73 = scmp.eq.s32.totalorder %s72, 0
      %s75 = sadd.s32 %s74, 1
      %s76 = scalar_select %p73, %s74, %s75
      %p79 = pneg %p73
      %p80 = scmp.eq.s32.totalorder %s15, 1
      %p81 = por %p79, %p80
      %p82 = scmp.ne.s32.totalorder %s74, %s77
      %p83 = scmp.eq.s32.totalorder %s15, 0
      %p84 = por %p82, %p83
      %p85 = scmp.ne.s32.totalorder %s74, %s77
      %p86 = scmp.eq.s32.totalorder %s20, 1
      %p87 = por %p85, %p86
      %p88 = scmp.ne.s32.totalorder %s77, %s78
      %p89 = scmp.eq.s32.totalorder %s20, 0
      %p90 = por %p88, %p89
      %p91 = scmp.ne.s32.totalorder %s77, %s78
      %p92 = scmp.eq.s32.totalorder %s21, 1
      %p93 = por %p91, %p92
      %p95 = scmp.ne.s32.totalorder %s78, %s94
      %p96 = scmp.eq.s32.totalorder %s21, 0
      %p97 = por %p95, %p96
      %s98 = ssub.s32 %s22, %s41
      %s99 = ssub.s32 %s23, %s37
      %s100 = sor.u32 %s98, %s99
      %p101 = scmp.eq.s32.totalorder %s100, 0
      %s103 = sadd.s32 %s102, 1
      %s104 = scalar_select %p101, %s102, %s103
      %p107 = pneg %p101
      %p108 = scmp.eq.s32.totalorder %s15, 1
      %p109 = por %p107, %p108
      %p110 = scmp.ne.s32.totalorder %s102, %s105
      %p111 = scmp.eq.s32.totalorder %s15, 0
      %p112 = por %p110, %p111
      %p113 = scmp.ne.s32.totalorder %s102, %s105
      %p114 = scmp.eq.s32.totalorder %s20, 1
      %p115 = por %p113, %p114
      %p116 = scmp.ne.s32.totalorder %s105, %s106
      %p117 = scmp.eq.s32.totalorder %s20, 0
      %p118 = por %p116, %p117
      %p119 = scmp.ne.s32.totalorder %s105, %s106
      %p120 = scmp.eq.s32.totalorder %s21, 1
      %p121 = por %p119, %p120
      %p123 = scmp.ne.s32.totalorder %s106, %s122
      %p124 = scmp.eq.s32.totalorder %s21, 0
      %p125 = por %p123, %p124
      %p126 = scmp.le.s32.totalorder 1, %s15
      %p127 = scmp.lt.s32.totalorder %s15, 3
      %p128 = pnand %p126, %p127
      %p129 = pneg %p128
      // Predicated region
      $region9: #{tpu_custom_call.1} parent=5 // pred_check
        _
      $region10: #{tpu_custom_call.1} parent=5 // pred_check_branch
        %131 = sbr.rel (%p128) target = $region12
      $region11: #{tpu_custom_call.1} parent=5 // pred_region
        %s132 = ssub.s32 %s15, 1
        // Predicated region
        $region13: #{tpu_custom_call.1} parent=11 // pred_check
          %p133 = pneg %p90
        $region14: #{tpu_custom_call.1} parent=11 // pred_check_branch
          %135 = sbr.rel (%p133) target = $region16
        $region15: #{tpu_custom_call.1} parent=11 // pred_region
          %s136 = smul.u32 16, %s27
          %138 = vsyncadd [#allocation7], 0
          %s139 = sadd.s32 %s26, %s136
          %s140 = smul.addr %s139, 8
          %s141 = scalar_lea.hbm %s1, %s140
          %s142 = sshll.u32 %s141, 4
          %s143 = int_to_ptr.hbm [resolvable:$true] %s142
          %s144 = sshll.u32 [#allocation6], 4
          %s145 = int_to_ptr.vmem [resolvable:$true] %s144
          %150 = dma.hbm_to_vmem [thread:$0]  %s143, 2048, %s145, [#allocation7], 128, 128, 8
        $region16: #{tpu_custom_call.1} parent=11 // pred_fallthru
          _
      $region12: #{tpu_custom_call.1} parent=5 // pred_fallthru
        _
      %p151 = scmp.lt.s32.totalorder %s15, 2
      // Predicated region
      $region17: #{tpu_custom_call.1} parent=5 // pred_check
        %p152 = pneg %p151
      $region18: #{tpu_custom_call.1} parent=5 // pred_check_branch
        %154 = sbr.rel (%p152) target = $region20
      $region19: #{tpu_custom_call.1} parent=5 // pred_region
        // Predicated region
        $region21: #{tpu_custom_call.1} parent=19 // pred_check
          %p155 = pneg %p56
        $region22: #{tpu_custom_call.1} parent=19 // pred_check_branch
          %157 = sbr.rel (%p155) target = $region24
        $region23: #{tpu_custom_call.1} parent=19 // pred_region
          %s158 = sand.u32 %s46, 1
          %s159 = scalar_lea.sflag [#allocation4], %s158
          %s160 = sand.u32 %s46, 1
          %s161 = smul.addr %s160, 128
          %s162 = scalar_lea.vmem [#allocation3], %s161
          %s163 = smul.u32 16, %s22
          %165 = vsyncadd %s159, 0
          %s166 = sadd.s32 %s24, %s163
          %s167 = smul.addr %s166, 8
          %s168 = scalar_lea.hbm %s0, %s167
          %s169 = sshll.u32 %s168, 4
          %s170 = int_to_ptr.hbm [resolvable:$true] %s169
          %s171 = sshll.u32 %s162, 4
          %s172 = int_to_ptr.vmem [resolvable:$true] %s171
          %177 = dma.hbm_to_vmem [thread:$0]  %s170, 2048, %s172, %s159, 128, 128, 8
        $region24: #{tpu_custom_call.1} parent=19 // pred_fallthru
          _
      $region20: #{tpu_custom_call.1} parent=5 // pred_fallthru
        _
      %p178 = scmp.le.s32.totalorder 1, %s15
      %p179 = scmp.lt.s32.totalorder %s15, 3
      %p180 = pnand %p178, %p179
      %p181 = pneg %p180
      // Predicated region
      $region25: #{tpu_custom_call.1} parent=5 // pred_check
        _
      $region26: #{tpu_custom_call.1} parent=5 // pred_check_branch
        %183 = sbr.rel (%p180) target = $region28
      $region27: #{tpu_custom_call.1} parent=5 // pred_region
        %s184 = ssub.s32 %s15, 1
        %s185 = sand.u32 %s49, 1
        %s186 = scalar_lea.sflag [#allocation4], %s185
        %s187 = sand.u32 %s49, 1
        %s188 = smul.addr %s187, 128
        %s189 = scalar_lea.vmem [#allocation3], %s188
        // Predicated region
        $region29: #{tpu_custom_call.1} parent=27 // pred_check
          %p190 = pneg %p62
        $region30: #{tpu_custom_call.1} parent=27 // pred_check_branch
          %192 = sbr.rel (%p190) target = $region32
        $region31: #{tpu_custom_call.1} parent=27 // pred_region
          %194 = dma.done %s186, 2048
        $region32: #{tpu_custom_call.1} parent=27 // pred_fallthru
          _
        // Predicated region
        $region33: #{tpu_custom_call.1} parent=27 // pred_check
          %p195 = pneg %p90
        $region34: #{tpu_custom_call.1} parent=27 // pred_check_branch
          %197 = sbr.rel (%p195) target = $region36
        $region35: #{tpu_custom_call.1} parent=27 // pred_region
          %199 = dma.done [#allocation7], 2048
        $region36: #{tpu_custom_call.1} parent=27 // pred_fallthru
          _
        %s200 = sand.u32 %s49, 1
        %s201 = scalar_lea.sflag [#allocation4], %s200
        %s202 = sand.u32 %s49, 1
        %s203 = smul.addr %s202, 128
        %s204 = scalar_lea.vmem [#allocation3], %s203
        %p205 = pneg %p62
        %p206 = pneg %p59
        %p207 = pneg %p90
        %p208 = pneg %p87
        %p209 = pneg %p118
        %p210 = pneg %p115
        %s211 = sand.u32 %s105, 1
        %s212 = scalar_lea.sflag [#allocation5], %s211
        %s213 = sand.u32 %s105, 1
        %s214 = smul.addr %s213, 128
        %s215 = scalar_lea.vmem [#allocation8], %s214
        %s216 = smul.u32 16, %s25
        %s217 = smul.u32 16, %s27
        %s218 = smul.u32 16, %s25
        %p219 = scmp.eq.s32.totalorder %s27, 0
        // Predicated region
        $region37: #{tpu_custom_call.1} parent=27 // pred_check
          %p220 = pneg %p219
        $region38: #{tpu_custom_call.1} parent=27 // pred_check_branch
          %222 = sbr.rel (%p220) target = $region40
        $region39: #{tpu_custom_call.1} parent=27 // pred_region
          %223 = vst [vmem:[#allocation2] sm:$0xff] 0.0
          %224 = vst [vmem:[#allocation2 + $0x8] sm:$0xff] 0.0
          %225 = vst [vmem:[#allocation2 + $0x10] sm:$0xff] 0.0
          %226 = vst [vmem:[#allocation2 + $0x18] sm:$0xff] 0.0
          %227 = vst [vmem:[#allocation2 + $0x20] sm:$0xff] 0.0
          %228 = vst [vmem:[#allocation2 + $0x28] sm:$0xff] 0.0
          %229 = vst [vmem:[#allocation2 + $0x30] sm:$0xff] 0.0
          %230 = vst [vmem:[#allocation2 + $0x38] sm:$0xff] 0.0
          %231 = vst [vmem:[#allocation2 + $0x40] sm:$0xff] 0.0
          %232 = vst [vmem:[#allocation2 + $0x48] sm:$0xff] 0.0
          %233 = vst [vmem:[#allocation2 + $0x50] sm:$0xff] 0.0
          %234 = vst [vmem:[#allocation2 + $0x58] sm:$0xff] 0.0
          %235 = vst [vmem:[#allocation2 + $0x60] sm:$0xff] 0.0
          %236 = vst [vmem:[#allocation2 + $0x68] sm:$0xff] 0.0
          %237 = vst [vmem:[#allocation2 + $0x70] sm:$0xff] 0.0
          %238 = vst [vmem:[#allocation2 + $0x78] sm:$0xff] 0.0
        $region40: #{tpu_custom_call.1} parent=27 // pred_fallthru
          _
        %v239 = vld [vmem:[#allocation2] sm:$0xff]
        %v240 = vld [vmem:[#allocation2 + $0x8] sm:$0xff]
        %v241 = vld [vmem:[#allocation2 + $0x10] sm:$0xff]
        %v242 = vld [vmem:[#allocation2 + $0x18] sm:$0xff]
        %v243 = vld [vmem:[#allocation2 + $0x20] sm:$0xff]
        %v244 = vld [vmem:[#allocation2 + $0x28] sm:$0xff]
        %v245 = vld [vmem:[#allocation2 + $0x30] sm:$0xff]
        %v246 = vld [vmem:[#allocation2 + $0x38] sm:$0xff]
        %v247 = vld [vmem:[#allocation2 + $0x40] sm:$0xff]
        %v248 = vld [vmem:[#allocation2 + $0x48] sm:$0xff]
        %v249 = vld [vmem:[#allocation2 + $0x50] sm:$0xff]
        %v250 = vld [vmem:[#allocation2 + $0x58] sm:$0xff]
        %v251 = vld [vmem:[#allocation2 + $0x60] sm:$0xff]
        %v252 = vld [vmem:[#allocation2 + $0x68] sm:$0xff]
        %v253 = vld [vmem:[#allocation2 + $0x70] sm:$0xff]
        %v254 = vld [vmem:[#allocation2 + $0x78] sm:$0xff]
        %v255 = vld [vmem:[%s189] sm:$0xff]
        %v256 = vld [vmem:[%s189 + $0x8] sm:$0xff]
        %v257 = vld [vmem:[%s189 + $0x10] sm:$0xff]
        %v258 = vld [vmem:[%s189 + $0x18] sm:$0xff]
        %v259 = vld [vmem:[%s189 + $0x20] sm:$0xff]
        %v260 = vld [vmem:[%s189 + $0x28] sm:$0xff]
        %v261 = vld [vmem:[%s189 + $0x30] sm:$0xff]
        %v262 = vld [vmem:[%s189 + $0x38] sm:$0xff]
        %v263 = vld [vmem:[%s189 + $0x40] sm:$0xff]
        %v264 = vld [vmem:[%s189 + $0x48] sm:$0xff]
        %v265 = vld [vmem:[%s189 + $0x50] sm:$0xff]
        %v266 = vld [vmem:[%s189 + $0x58] sm:$0xff]
        %v267 = vld [vmem:[%s189 + $0x60] sm:$0xff]
        %v268 = vld [vmem:[%s189 + $0x68] sm:$0xff]
        %v269 = vld [vmem:[%s189 + $0x70] sm:$0xff]
        %v270 = vld [vmem:[%s189 + $0x78] sm:$0xff]
        %v271 = vld [vmem:[#allocation6] sm:$0xff]
        %v272 = vld [vmem:[#allocation6 + $0x8] sm:$0xff]
        %v273 = vld [vmem:[#allocation6 + $0x10] sm:$0xff]
        %v274 = vld [vmem:[#allocation6 + $0x18] sm:$0xff]
        %v275 = vld [vmem:[#allocation6 + $0x20] sm:$0xff]
        %v276 = vld [vmem:[#allocation6 + $0x28] sm:$0xff]
        %v277 = vld [vmem:[#allocation6 + $0x30] sm:$0xff]
        %v278 = vld [vmem:[#allocation6 + $0x38] sm:$0xff]
        %v279 = vld [vmem:[#allocation6 + $0x40] sm:$0xff]
        %v280 = vld [vmem:[#allocation6 + $0x48] sm:$0xff]
        %v281 = vld [vmem:[#allocation6 + $0x50] sm:$0xff]
        %v282 = vld [vmem:[#allocation6 + $0x58] sm:$0xff]
        %v283 = vld [vmem:[#allocation6 + $0x60] sm:$0xff]
        %v284 = vld [vmem:[#allocation6 + $0x68] sm:$0xff]
        %v285 = vld [vmem:[#allocation6 + $0x70] sm:$0xff]
        %v286 = vld [vmem:[#allocation6 + $0x78] sm:$0xff]
        %287 = vmatpush.msra.mxu0 %v286
        %288 = vmatpush.msra.mxu0 %v285
        %289 = vmatpush.msra.mxu0 %v284
        %290 = vmatpush.msra.mxu0 %v283
        %291 = vmatpush.msra.mxu0 %v282
        %292 = vmatpush.msra.mxu0 %v281
        %293 = vmatpush.msra.mxu0 %v280
        %294 = vmatpush.msra.mxu0 %v279
        %295 = vmatpush.msra.mxu0 %v278
        %296 = vmatpush.msra.mxu0 %v277
        %297 = vmatpush.msra.mxu0 %v276
        %298 = vmatpush.msra.mxu0 %v275
        %299 = vmatpush.msra.mxu0 %v274
        %300 = vmatpush.msra.mxu0 %v273
        %301 = vmatpush.msra.mxu0 %v272
        %302 = vmatpush.msra.mxu0 %v271
        %303 = vmatmul.f32.gmra.mxu0 %v255
        %v304 = vpop.f32.mrf.mxu0
        %v305 = vadd.f32 0.0, %v304
        %306 = vmatmul.f32.gmra.mxu0 %v256
        %v307 = vpop.f32.mrf.mxu0
        %v308 = vadd.f32 0.0, %v307
        %309 = vmatmul.f32.gmra.mxu0 %v257
        %v310 = vpop.f32.mrf.mxu0
        %v311 = vadd.f32 0.0, %v310
        %312 = vmatmul.f32.gmra.mxu0 %v258
        %v313 = vpop.f32.mrf.mxu0
        %v314 = vadd.f32 0.0, %v313
        %315 = vmatmul.f32.gmra.mxu0 %v259
        %v316 = vpop.f32.mrf.mxu0
        %v317 = vadd.f32 0.0, %v316
        %318 = vmatmul.f32.gmra.mxu0 %v260
        %v319 = vpop.f32.mrf.mxu0
        %v320 = vadd.f32 0.0, %v319
        %321 = vmatmul.f32.gmra.mxu0 %v261
        %v322 = vpop.f32.mrf.mxu0
        %v323 = vadd.f32 0.0, %v322
        %324 = vmatmul.f32.gmra.mxu0 %v262
        %v325 = vpop.f32.mrf.mxu0
        %v326 = vadd.f32 0.0, %v325
        %327 = vmatmul.f32.gmra.mxu0 %v263
        %v328 = vpop.f32.mrf.mxu0
        %v329 = vadd.f32 0.0, %v328
        %330 = vmatmul.f32.gmra.mxu0 %v264
        %v331 = vpop.f32.mrf.mxu0
        %v332 = vadd.f32 0.0, %v331
        %333 = vmatmul.f32.gmra.mxu0 %v265
        %v334 = vpop.f32.mrf.mxu0
        %v335 = vadd.f32 0.0, %v334
        %336 = vmatmul.f32.gmra.mxu0 %v266
        %v337 = vpop.f32.mrf.mxu0
        %v338 = vadd.f32 0.0, %v337
        %339 = vmatmul.f32.gmra.mxu0 %v267
        %v340 = vpop.f32.mrf.mxu0
        %v341 = vadd.f32 0.0, %v340
        %342 = vmatmul.f32.gmra.mxu0 %v268
        %v343 = vpop.f32.mrf.mxu0
        %v344 = vadd.f32 0.0, %v343
        %345 = vmatmul.f32.gmra.mxu0 %v269
        %v346 = vpop.f32.mrf.mxu0
        %v347 = vadd.f32 0.0, %v346
        %348 = vmatmul.f32.gmra.mxu0 %v270
        %v349 = vpop.f32.mrf.mxu0
        %v350 = vadd.f32 0.0, %v349
        %351 = vdwg.mxu0
        %v352 = vadd.f32 %v239, %v305
        %v353 = vadd.f32 %v240, %v308
        %v354 = vadd.f32 %v241, %v311
        %v355 = vadd.f32 %v242, %v314
        %v356 = vadd.f32 %v243, %v317
        %v357 = vadd.f32 %v244, %v320
        %v358 = vadd.f32 %v245, %v323
        %v359 = vadd.f32 %v246, %v326
        %v360 = vadd.f32 %v247, %v329
        %v361 = vadd.f32 %v248, %v332
        %v362 = vadd.f32 %v249, %v335
        %v363 = vadd.f32 %v250, %v338
        %v364 = vadd.f32 %v251, %v341
        %v365 = vadd.f32 %v252, %v344
        %v366 = vadd.f32 %v253, %v347
        %v367 = vadd.f32 %v254, %v350
        %368 = vst [vmem:[#allocation2] sm:$0xff] %v352
        %369 = vst [vmem:[#allocation2 + $0x8] sm:$0xff] %v353
        %370 = vst [vmem:[#allocation2 + $0x10] sm:$0xff] %v354
        %371 = vst [vmem:[#allocation2 + $0x18] sm:$0xff] %v355
        %372 = vst [vmem:[#allocation2 + $0x20] sm:$0xff] %v356
        %373 = vst [vmem:[#allocation2 + $0x28] sm:$0xff] %v357
        %374 = vst [vmem:[#allocation2 + $0x30] sm:$0xff] %v358
        %375 = vst [vmem:[#allocation2 + $0x38] sm:$0xff] %v359
        %376 = vst [vmem:[#allocation2 + $0x40] sm:$0xff] %v360
        %377 = vst [vmem:[#allocation2 + $0x48] sm:$0xff] %v361
        %378 = vst [vmem:[#allocation2 + $0x50] sm:$0xff] %v362
        %379 = vst [vmem:[#allocation2 + $0x58] sm:$0xff] %v363
        %380 = vst [vmem:[#allocation2 + $0x60] sm:$0xff] %v364
        %381 = vst [vmem:[#allocation2 + $0x68] sm:$0xff] %v365
        %382 = vst [vmem:[#allocation2 + $0x70] sm:$0xff] %v366
        %383 = vst [vmem:[#allocation2 + $0x78] sm:$0xff] %v367
        // Predicated region
        $region41: #{tpu_custom_call.1} parent=27 // pred_check
          %p384 = pneg %p219
        $region42: #{tpu_custom_call.1} parent=27 // pred_check_branch
          %386 = sbr.rel (%p384) target = $region44
        $region43: #{tpu_custom_call.1} parent=27 // pred_region
          %v387 = vld [vmem:[#allocation2] sm:$0xff]
          %v388 = vld [vmem:[#allocation2 + $0x8] sm:$0xff]
          %v389 = vld [vmem:[#allocation2 + $0x10] sm:$0xff]
          %v390 = vld [vmem:[#allocation2 + $0x18] sm:$0xff]
          %v391 = vld [vmem:[#allocation2 + $0x20] sm:$0xff]
          %v392 = vld [vmem:[#allocation2 + $0x28] sm:$0xff]
          %v393 = vld [vmem:[#allocation2 + $0x30] sm:$0xff]
          %v394 = vld [vmem:[#allocation2 + $0x38] sm:$0xff]
          %v395 = vld [vmem:[#allocation2 + $0x40] sm:$0xff]
          %v396 = vld [vmem:[#allocation2 + $0x48] sm:$0xff]
          %v397 = vld [vmem:[#allocation2 + $0x50] sm:$0xff]
          %v398 = vld [vmem:[#allocation2 + $0x58] sm:$0xff]
          %v399 = vld [vmem:[#allocation2 + $0x60] sm:$0xff]
          %v400 = vld [vmem:[#allocation2 + $0x68] sm:$0xff]
          %v401 = vld [vmem:[#allocation2 + $0x70] sm:$0xff]
          %v402 = vld [vmem:[#allocation2 + $0x78] sm:$0xff]
          %403 = vst [vmem:[%s215] sm:$0xff] %v387
          %404 = vst [vmem:[%s215 + $0x8] sm:$0xff] %v388
          %405 = vst [vmem:[%s215 + $0x10] sm:$0xff] %v389
          %406 = vst [vmem:[%s215 + $0x18] sm:$0xff] %v390
          %407 = vst [vmem:[%s215 + $0x20] sm:$0xff] %v391
          %408 = vst [vmem:[%s215 + $0x28] sm:$0xff] %v392
          %409 = vst [vmem:[%s215 + $0x30] sm:$0xff] %v393
          %410 = vst [vmem:[%s215 + $0x38] sm:$0xff] %v394
          %411 = vst [vmem:[%s215 + $0x40] sm:$0xff] %v395
          %412 = vst [vmem:[%s215 + $0x48] sm:$0xff] %v396
          %413 = vst [vmem:[%s215 + $0x50] sm:$0xff] %v397
          %414 = vst [vmem:[%s215 + $0x58] sm:$0xff] %v398
          %415 = vst [vmem:[%s215 + $0x60] sm:$0xff] %v399
          %416 = vst [vmem:[%s215 + $0x68] sm:$0xff] %v400
          %417 = vst [vmem:[%s215 + $0x70] sm:$0xff] %v401
          %418 = vst [vmem:[%s215 + $0x78] sm:$0xff] %v402
        $region44: #{tpu_custom_call.1} parent=27 // pred_fallthru
          _
        %s419 = sand.u32 %s105, 1
        %s420 = scalar_lea.sflag [#allocation5], %s419
        %s421 = sand.u32 %s105, 1
        %s422 = smul.addr %s421, 128
        %s423 = scalar_lea.vmem [#allocation8], %s422
        // Predicated region
        $region45: #{tpu_custom_call.1} parent=27 // pred_check
          %p424 = pneg %p115
        $region46: #{tpu_custom_call.1} parent=27 // pred_check_branch
          %426 = sbr.rel (%p424) target = $region48
        $region47: #{tpu_custom_call.1} parent=27 // pred_region
          %s427 = smul.u32 16, %s25
          %429 = vsyncadd %s420, 0
          %s430 = sadd.s32 %s26, %s427
          %s431 = smul.addr %s430, 8
          %s432 = scalar_lea.hbm %s2, %s431
          %s433 = sshll.u32 %s423, 4
          %s434 = int_to_ptr.vmem [resolvable:$true] %s433
          %s435 = sshll.u32 %s432, 4
          %s436 = int_to_ptr.hbm [resolvable:$true] %s435
          %441 = dma.vmem_to_hbm [thread:$0]  %s434, 2048, %s436, %s420, 128, 128, 8
        $region48: #{tpu_custom_call.1} parent=27 // pred_fallthru
          _
      $region28: #{tpu_custom_call.1} parent=5 // pred_fallthru
        _
      %p442 = scmp.le.s32.totalorder 2, %s15
      // Predicated region
      $region49: #{tpu_custom_call.1} parent=5 // pred_check
        %p443 = pneg %p442
      $region50: #{tpu_custom_call.1} parent=5 // pred_check_branch
        %445 = sbr.rel (%p443) target = $region52
      $region51: #{tpu_custom_call.1} parent=5 // pred_region
        %s446 = ssub.s32 %s15, 2
        // Predicated region
        $region53: #{tpu_custom_call.1} parent=51 // pred_check
          %p447 = pneg %p121
        $region54: #{tpu_custom_call.1} parent=51 // pred_check_branch
          %449 = sbr.rel (%p447) target = $region56
        $region55: #{tpu_custom_call.1} parent=51 // pred_region
          %s450 = sand.u32 %s106, 1
          %s451 = scalar_lea.sflag [#allocation5], %s450
          %s452 = sand.u32 %s106, 1
          %s453 = smul.addr %s452, 128
          %s454 = scalar_lea.vmem [#allocation8], %s453
          %456 = dma.done %s451, 2048
        $region56: #{tpu_custom_call.1} parent=51 // pred_fallthru
          _
      $region52: #{tpu_custom_call.1} parent=5 // pred_fallthru
        _
    $region6: #{tpu_custom_call.1} parent=1 // loop_footer
      %s19 = sadd.s32 1, %s15
    $region7: #{tpu_custom_call.1} parent=1 // loop_footer_branch
      %14 = sbr.rel target = $region3
    $region8: #{tpu_custom_call.1} parent=1 // loop_exit
      _
    %457 = vsyncpa [#allocation4], 1
    %s458 = scalar_lea.sflag [#allocation4], 1
    %459 = vsyncpa %s458, 1
    %460 = vsyncpa [#allocation7], 1
    %461 = vsyncpa [#allocation5], 1
    %s462 = scalar_lea.sflag [#allocation5], 1
    %463 = vsyncpa %s462, 1

</llo_original>
